<compile_context>
chip_gen: v7x
topology: tpu7x:2x2x1
jax: 0.10.0
libtpu: 0.0.40
codegen_flags: <defaults>
</compile_context>

<pallas_src>
import functools

import numpy as np

import jax
import jax.numpy as jnp
from jax.experimental import pallas as pl
from jax.experimental.pallas import tpu as pltpu


# (kernel_size, stride, padding, dilation, ceil_mode)
_POOL_CFGS = (
    (3, 3, 0, 1, False),   # pool_0  (stride defaults to kernel_size)
    (4, 2, 2, 1, False),   # pool_1
    (3, 1, 1, 1, False),   # pool_2
    (5, 2, 2, 1, True),    # pool_3
    (3, 1, 1, 2, False),   # pool_4  (torch >= 1.12 branch: dilation=2)
    (2, 1, 0, 1, True),    # pool_5  (indices discarded in forward)
    (5, 1, 2, 1, False),   # pool_6  (values + indices returned)
)


# ---------------------------------------------------------------------------
# Static shape math (mirrors PyTorch's MaxPool1d output-size formula,
# including the ceil_mode "window must start inside input+left pad" rule).
# ---------------------------------------------------------------------------
def _pool_out_len(lin, k, s, p, d, ceil_mode):
    eff_k = d * (k - 1) + 1
    num = lin + 2 * p - eff_k
    if ceil_mode:
        out = -(-num // s) + 1
        if (out - 1) * s >= lin + p:
            out -= 1
    else:
        out = num // s + 1
    assert out > 0, "pool produced empty output"
    return out


def _plan_stages(l):
    """Static per-stage plan: lengths, staging decision, scratch-region layout."""
    lens = [l]
    for cfg in _POOL_CFGS:
        lens.append(_pool_out_len(lens[-1], *cfg))
    out_lens = lens[1:]

    stages = []
    offset = 0  # running 8-aligned region base inside the shared scratch
    for si, (cfg, lin, ol) in enumerate(zip(_POOL_CFGS, lens[:-1], out_lens)):
        k, s, p, d, _cm = cfg
        max_tap = (ol - 1) * s + (k - 1) * d - p   # max input coord any tap touches
        in_bounds = (p == 0) and (max_tap < lin)
        # Stage 0 is always staged: its input is the freshly transposed block
        # and strided taps want a ref.  Later in-bounds stages (pool_5) tap the
        # value-form stage input directly -- no staging copy.
        staged = (si == 0) or (not in_bounds)
        st = dict(k=k, s=s, p=p, d=d, lin=lin, ol=ol, staged=staged)
        if staged:
            data_start = offset + (8 if p > 0 else 0)  # keep data sublane-aligned
            right = max(max_tap + 1 - lin, 0)          # rows of right -inf pad read
            st["data_start"] = data_start
            st["right"] = right
            region_end = data_start + max(lin + right, lin)
            offset = ((region_end + 7) // 8) * 8
        stages.append(st)
    return stages, out_lens, offset  # offset == total scratch rows (8-aligned)


def _pick_r_tile(rows):
    # Lane-axis tile: multiple of 128.  Bigger tiles amortize per-grid-step
    # overhead; keep >=2 grid steps when rows allow (v7x megacore), cap at 1024.
    if rows <= 256:
        return 128
    target = min(1024, -(-rows // 2))
    return max(128, (target // 128) * 128)


# ---------------------------------------------------------------------------
# Kernel: the whole 7-stage chain runs on one lane tile of R_TILE rows.
# ---------------------------------------------------------------------------
def _maxpool_chain_kernel(x_ref, val_ref, idx_ref, scr_ref, *, stages):
    r = x_ref.shape[0]  # R_TILE (rows on the lane axis after the transpose)
    neg8 = jnp.full((8, r), -jnp.inf, jnp.float32)

    # (R_TILE, L) -> (L, R_TILE): pooled axis onto sublanes, rows onto lanes.
    # Pure XLU work; the wrapper no longer does an extra HBM transpose pass.
    x = jnp.transpose(x_ref[...])

    n_stages = len(stages)
    for si, st in enumerate(stages):
        k, s, p, d = st["k"], st["s"], st["p"], st["d"]
        lin, ol = st["lin"], st["ol"]
        last = si == n_stages - 1

        if st["staged"]:
            ds0 = st["data_start"]
            right = st["right"]
            if p > 0:
                # Single unmasked full-sublane -inf fill covering the left pad.
                scr_ref[pl.ds(ds0 - 8, 8), :] = neg8
            if right > 0:
                scr_ref[pl.ds(ds0 + lin, right), :] = neg8[:right]
            # Sublane-aligned data store (only the tail sublane is masked).
            scr_ref[pl.ds(ds0, lin), :] = x

            def tap(t, _ds=ds0, _p=p, _d=d, _s=s, _ol=ol):
                start = _ds - _p + t * _d
                if _s == 1:
                    return scr_ref[pl.ds(start, _ol), :]
                return scr_ref[pl.ds(start, _ol, stride=_s), :]
        else:
            # No padding and all taps in bounds: slice the value directly.
            def tap(t, _x=x, _d=d, _s=s, _ol=ol):
                start = t * _d
                if _s == 1:
                    return _x[start:start + _ol, :]
                return _x[start:start + (_ol - 1) * _s + 1:_s, :]

        if not last:
            # values only (pool_5's indices are discarded in forward()).
            v = tap(0)
            for t in range(1, k):
                v = jnp.maximum(v, tap(t))
            x = v
        else:
            # pool_6: values + first-max indices (relative to pool_6's input).
            base = jax.lax.broadcasted_iota(jnp.int32, (ol, r), 0) * s
            v = tap(0)
            idx = base + jnp.int32(-p)
            for t in range(1, k):
                tv = tap(t)
                better = tv > v  # strict '>' keeps the earliest max (PyTorch)
                v = jnp.where(better, tv, v)
                idx = jnp.where(better, base + jnp.int32(t * d - p), idx)
            val_ref[...] = v
            idx_ref[...] = idx


# ---------------------------------------------------------------------------
# Host wrapper
# ---------------------------------------------------------------------------
def maxpool1d_chain(x):
    n, c, l = x.shape
    x = x.astype(jnp.float32)
    stages, out_lens, scratch_rows = _plan_stages(l)
    l_final = out_lens[-1]

    rows = n * c
    r_tile = _pick_r_tile(rows)
    rows_pad = ((rows + r_tile - 1) // r_tile) * r_tile

    # Free (contiguous) reshape -- no host-side transpose / extra HBM pass.
    xr = x.reshape(rows, l)
    if rows_pad != rows:
        # TODO(synk): if production N*C is genuinely tiny, batch more problems
        # per call instead of padding lanes (padded lanes are wasted work).
        xr = jnp.pad(xr, ((0, rows_pad - rows), (0, 0)))

    kernel = functools.partial(_maxpool_chain_kernel, stages=stages)

    vals_t, idxs_t = pl.pallas_call(
        kernel,
        out_shape=(
            jax.ShapeDtypeStruct((l_final, rows_pad), jnp.float32),
            jax.ShapeDtypeStruct((l_final, rows_pad), jnp.int32),
        ),
        grid_spec=pltpu.PrefetchScalarGridSpec(
            num_scalar_prefetch=0,
            grid=(rows_pad // r_tile,),
            in_specs=[pl.BlockSpec((r_tile, l), lambda i: (i, 0))],
            out_specs=(
                pl.BlockSpec((l_final, r_tile), lambda i: (0, i)),
                pl.BlockSpec((l_final, r_tile), lambda i: (0, i)),
            ),
            scratch_shapes=[pltpu.VMEM((scratch_rows, r_tile), jnp.float32)],
        ),
        compiler_params=pltpu.CompilerParams(
            dimension_semantics=("parallel",),
        ),
    )(xr)

    # Tiny outputs: transpose back on the host (cheap), slice off padded lanes.
    vals = jnp.transpose(vals_t[:, :rows]).reshape(n, c, l_final)
    idxs = jnp.transpose(idxs_t[:, :rows]).reshape(n, c, l_final)
    return vals, idxs


# ---------------------------------------------------------------------------
# Pure-numpy reference of the PyTorch forward pass (for the self-test).
# ---------------------------------------------------------------------------
def _ref_pool_chain(x_np):
    cur = np.asarray(x_np, np.float32)
    idx_out = None
    for (k, s, p, d, cm) in _POOL_CFGS:
        n, c, lin = cur.shape
        ol = _pool_out_len(lin, k, s, p, d, cm)
        vals = np.empty((n, c, ol), np.float32)
        idxs = np.empty((n, c, ol), np.int64)
        for o in range(ol):
            best_v = None
            best_i = None
            for t in range(k):
                i = o * s + t * d - p
                if 0 <= i < lin:
                    v = cur[:, :, i]
                else:
                    v = np.full((n, c), -np.inf, np.float32)
                if best_v is None:
                    best_v = v.copy()
                    best_i = np.full((n, c), i, np.int64)
                else:
                    better = v > best_v
                    best_v = np.where(better, v, best_v)
                    best_i = np.where(better, i, best_i)
            vals[:, :, o] = best_v
            idxs[:, :, o] = best_i
        cur = vals
        idx_out = idxs
    return cur, idx_out


def _check(n, c, l, key):
    x = jax.random.uniform(key, (n, c, l), dtype=jnp.float32)
    vals, idxs = maxpool1d_chain(x)
    jax.block_until_ready((vals, idxs))

    cur = l
    for cfg in _POOL_CFGS:
        cur = _pool_out_len(cur, *cfg)
    assert vals.shape == idxs.shape == (n, c, cur), (vals.shape, cur)
    assert vals.dtype == jnp.float32 and idxs.dtype == jnp.int32

    ref_v, ref_i = _ref_pool_chain(np.asarray(x))
    assert np.allclose(np.asarray(vals), ref_v, rtol=1e-6, atol=0.0)
    assert np.array_equal(np.asarray(idxs), ref_i.astype(np.int32))


if __name__ == "__main__":
    key = jax.random.PRNGKey(0)
    k0, k1 = jax.random.split(key)
    # Same shape as the pnnx test (rows = 128 fills a full lane tile).
    _check(1, 128, 128, k0)
    # Small-rows path (lane padding + shorter chain) for extra coverage.
    _check(2, 4, 64, k1)
    print("KERNEL_OK")
</pallas_src>

<mosaic_0001>
module attributes {stable_mosaic.version = 11 : i64} {
  func.func @_maxpool_chain_kernel(%arg0: i32, %arg1: memref<128x128xf32, #tpu.memory_space<vmem>>, %arg2: memref<9x128xf32, #tpu.memory_space<vmem>>, %arg3: memref<9x128xi32, #tpu.memory_space<vmem>>, %arg4: memref<304x128xf32, #tpu.memory_space<vmem>>) attributes {dimension_semantics = [#tpu.dimension_semantics<parallel>], iteration_bounds = array<i64: 1>, scalar_prefetch = 0 : i64, scratch_operands = 1 : i64, tpu.core_type = #tpu.core_type<tc>, window_params = [{transform_indices = @transform_0, window_bounds = array<i64: 128, 128>}, {transform_indices = @transform_1, window_bounds = array<i64: 9, 128>}, {transform_indices = @transform_2, window_bounds = array<i64: 9, 128>}]} {
    %cst = arith.constant 0xFF800000 : f32
    %0 = vector.broadcast %cst : f32 to vector<8x128xf32>
    %c0 = arith.constant 0 : index
    %c0_0 = arith.constant 0 : index
    %1 = vector.load %arg1[%c0, %c0_0] : memref<128x128xf32, #tpu.memory_space<vmem>>, vector<128x128xf32>
    %2 = tpu.transpose %1, [1, 0] : vector<128x128xf32> -> vector<128x128xf32>
    %c0_1 = arith.constant 0 : index
    %c0_2 = arith.constant 0 : index
    %3 = vector.load %arg4[%c0_1, %c0_2] : memref<304x128xf32, #tpu.memory_space<vmem>>, vector<128x128xf32>
    tpu.vector_store %arg4[%c0_1, %c0_2], %2 {strides = array<i32>} : memref<304x128xf32, #tpu.memory_space<vmem>>, vector<128x128xf32>,
    %c0_3 = arith.constant 0 : index
    %c0_4 = arith.constant 0 : index
    %4 = tpu.strided_load %arg4[%c0_3, %c0_4] {strides = array<i32: 3, 1>} : memref<304x128xf32, #tpu.memory_space<vmem>>, vector<42x128xf32>
    %c1 = arith.constant 1 : index
    %c0_5 = arith.constant 0 : index
    %5 = tpu.strided_load %arg4[%c1, %c0_5] {strides = array<i32: 3, 1>} : memref<304x128xf32, #tpu.memory_space<vmem>>, vector<42x128xf32>
    %6 = arith.maximumf %4, %5 : vector<42x128xf32>
    %c2 = arith.constant 2 : index
    %c0_6 = arith.constant 0 : index
    %7 = tpu.strided_load %arg4[%c2, %c0_6] {strides = array<i32: 3, 1>} : memref<304x128xf32, #tpu.memory_space<vmem>>, vector<42x128xf32>
    %8 = arith.maximumf %6, %7 : vector<42x128xf32>
    %c128 = arith.constant 128 : index
    %c0_7 = arith.constant 0 : index
    %9 = vector.load %arg4[%c128, %c0_7] : memref<304x128xf32, #tpu.memory_space<vmem>>, vector<8x128xf32>
    tpu.vector_store %arg4[%c128, %c0_7], %0 {strides = array<i32>} : memref<304x128xf32, #tpu.memory_space<vmem>>, vector<8x128xf32>,
    %10 = vector.extract_strided_slice %0 {offsets = [0, 0], sizes = [2, 128], strides = [1, 1]} : vector<8x128xf32> to vector<2x128xf32>
    %c178 = arith.constant 178 : index
    %c0_8 = arith.constant 0 : index
    %11 = vector.load %arg4[%c178, %c0_8] : memref<304x128xf32, #tpu.memory_space<vmem>>, vector<2x128xf32>
    tpu.vector_store %arg4[%c178, %c0_8], %10 {strides = array<i32>} : memref<304x128xf32, #tpu.memory_space<vmem>>, vector<2x128xf32>,
    %c136 = arith.constant 136 : index
    %c0_9 = arith.constant 0 : index
    %12 = vector.load %arg4[%c136, %c0_9] : memref<304x128xf32, #tpu.memory_space<vmem>>, vector<42x128xf32>
    tpu.vector_store %arg4[%c136, %c0_9], %8 {strides = array<i32>} : memref<304x128xf32, #tpu.memory_space<vmem>>, vector<42x128xf32>,
    %c134 = arith.constant 134 : index
    %c0_10 = arith.constant 0 : index
    %13 = tpu.strided_load %arg4[%c134, %c0_10] {strides = array<i32: 2, 1>} : memref<304x128xf32, #tpu.memory_space<vmem>>, vector<22x128xf32>
    %c135 = arith.constant 135 : index
    %c0_11 = arith.constant 0 : index
    %14 = tpu.strided_load %arg4[%c135, %c0_11] {strides = array<i32: 2, 1>} : memref<304x128xf32, #tpu.memory_space<vmem>>, vector<22x128xf32>
    %15 = arith.maximumf %13, %14 : vector<22x128xf32>
    %c136_12 = arith.constant 136 : index
    %c0_13 = arith.constant 0 : index
    %16 = tpu.strided_load %arg4[%c136_12, %c0_13] {strides = array<i32: 2, 1>} : memref<304x128xf32, #tpu.memory_space<vmem>>, vector<22x128xf32>
    %17 = arith.maximumf %15, %16 : vector<22x128xf32>
    %c137 = arith.constant 137 : index
    %c0_14 = arith.constant 0 : index
    %18 = tpu.strided_load %arg4[%c137, %c0_14] {strides = array<i32: 2, 1>} : memref<304x128xf32, #tpu.memory_space<vmem>>, vector<22x128xf32>
    %19 = arith.maximumf %17, %18 : vector<22x128xf32>
    %c184 = arith.constant 184 : index
    %c0_15 = arith.constant 0 : index
    %20 = vector.load %arg4[%c184, %c0_15] : memref<304x128xf32, #tpu.memory_space<vmem>>, vector<8x128xf32>
    tpu.vector_store %arg4[%c184, %c0_15], %0 {strides = array<i32>} : memref<304x128xf32, #tpu.memory_space<vmem>>, vector<8x128xf32>,
    %21 = vector.extract_strided_slice %0 {offsets = [0, 0], sizes = [1, 128], strides = [1, 1]} : vector<8x128xf32> to vector<1x128xf32>
    %c214 = arith.constant 214 : index
    %c0_16 = arith.constant 0 : index
    %22 = vector.load %arg4[%c214, %c0_16] : memref<304x128xf32, #tpu.memory_space<vmem>>, vector<1x128xf32>
    tpu.vector_store %arg4[%c214, %c0_16], %21 {strides = array<i32>} : memref<304x128xf32, #tpu.memory_space<vmem>>, vector<1x128xf32>,
    %c192 = arith.constant 192 : index
    %c0_17 = arith.constant 0 : index
    %23 = vector.load %arg4[%c192, %c0_17] : memref<304x128xf32, #tpu.memory_space<vmem>>, vector<22x128xf32>
    tpu.vector_store %arg4[%c192, %c0_17], %19 {strides = array<i32>} : memref<304x128xf32, #tpu.memory_space<vmem>>, vector<22x128xf32>,
    %c191 = arith.constant 191 : index
    %c0_18 = arith.constant 0 : index
    %24 = vector.load %arg4[%c191, %c0_18] : memref<304x128xf32, #tpu.memory_space<vmem>>, vector<22x128xf32>
    %c192_19 = arith.constant 192 : index
    %c0_20 = arith.constant 0 : index
    %25 = vector.load %arg4[%c192_19, %c0_20] : memref<304x128xf32, #tpu.memory_space<vmem>>, vector<22x128xf32>
    %26 = arith.maximumf %24, %25 : vector<22x128xf32>
    %c193 = arith.constant 193 : index
    %c0_21 = arith.constant 0 : index
    %27 = vector.load %arg4[%c193, %c0_21] : memref<304x128xf32, #tpu.memory_space<vmem>>, vector<22x128xf32>
    %28 = arith.maximumf %26, %27 : vector<22x128xf32>
    %c216 = arith.constant 216 : index
    %c0_22 = arith.constant 0 : index
    %29 = vector.load %arg4[%c216, %c0_22] : memref<304x128xf32, #tpu.memory_space<vmem>>, vector<8x128xf32>
    tpu.vector_store %arg4[%c216, %c0_22], %0 {strides = array<i32>} : memref<304x128xf32, #tpu.memory_space<vmem>>, vector<8x128xf32>,
    %30 = vector.extract_strided_slice %0 {offsets = [0, 0], sizes = [3, 128], strides = [1, 1]} : vector<8x128xf32> to vector<3x128xf32>
    %c246 = arith.constant 246 : index
    %c0_23 = arith.constant 0 : index
    %31 = vector.load %arg4[%c246, %c0_23] : memref<304x128xf32, #tpu.memory_space<vmem>>, vector<3x128xf32>
    tpu.vector_store %arg4[%c246, %c0_23], %30 {strides = array<i32>} : memref<304x128xf32, #tpu.memory_space<vmem>>, vector<3x128xf32>,
    %c224 = arith.constant 224 : index
    %c0_24 = arith.constant 0 : index
    %32 = vector.load %arg4[%c224, %c0_24] : memref<304x128xf32, #tpu.memory_space<vmem>>, vector<22x128xf32>
    tpu.vector_store %arg4[%c224, %c0_24], %28 {strides = array<i32>} : memref<304x128xf32, #tpu.memory_space<vmem>>, vector<22x128xf32>,
    %c222 = arith.constant 222 : index
    %c0_25 = arith.constant 0 : index
    %33 = tpu.strided_load %arg4[%c222, %c0_25] {strides = array<i32: 2, 1>} : memref<304x128xf32, #tpu.memory_space<vmem>>, vector<12x128xf32>
    %c223 = arith.constant 223 : index
    %c0_26 = arith.constant 0 : index
    %34 = tpu.strided_load %arg4[%c223, %c0_26] {strides = array<i32: 2, 1>} : memref<304x128xf32, #tpu.memory_space<vmem>>, vector<12x128xf32>
    %35 = arith.maximumf %33, %34 : vector<12x128xf32>
    %c224_27 = arith.constant 224 : index
    %c0_28 = arith.constant 0 : index
    %36 = tpu.strided_load %arg4[%c224_27, %c0_28] {strides = array<i32: 2, 1>} : memref<304x128xf32, #tpu.memory_space<vmem>>, vector<12x128xf32>
    %37 = arith.maximumf %35, %36 : vector<12x128xf32>
    %c225 = arith.constant 225 : index
    %c0_29 = arith.constant 0 : index
    %38 = tpu.strided_load %arg4[%c225, %c0_29] {strides = array<i32: 2, 1>} : memref<304x128xf32, #tpu.memory_space<vmem>>, vector<12x128xf32>
    %39 = arith.maximumf %37, %38 : vector<12x128xf32>
    %c226 = arith.constant 226 : index
    %c0_30 = arith.constant 0 : index
    %40 = tpu.strided_load %arg4[%c226, %c0_30] {strides = array<i32: 2, 1>} : memref<304x128xf32, #tpu.memory_space<vmem>>, vector<12x128xf32>
    %41 = arith.maximumf %39, %40 : vector<12x128xf32>
    %c256 = arith.constant 256 : index
    %c0_31 = arith.constant 0 : index
    %42 = vector.load %arg4[%c256, %c0_31] : memref<304x128xf32, #tpu.memory_space<vmem>>, vector<8x128xf32>
    tpu.vector_store %arg4[%c256, %c0_31], %0 {strides = array<i32>} : memref<304x128xf32, #tpu.memory_space<vmem>>, vector<8x128xf32>,
    %43 = vector.extract_strided_slice %0 {offsets = [0, 0], sizes = [1, 128], strides = [1, 1]} : vector<8x128xf32> to vector<1x128xf32>
    %c276 = arith.constant 276 : index
    %c0_32 = arith.constant 0 : index
    %44 = vector.load %arg4[%c276, %c0_32] : memref<304x128xf32, #tpu.memory_space<vmem>>, vector<1x128xf32>
    tpu.vector_store %arg4[%c276, %c0_32], %43 {strides = array<i32>} : memref<304x128xf32, #tpu.memory_space<vmem>>, vector<1x128xf32>,
    %c264 = arith.constant 264 : index
    %c0_33 = arith.constant 0 : index
    %45 = vector.load %arg4[%c264, %c0_33] : memref<304x128xf32, #tpu.memory_space<vmem>>, vector<12x128xf32>
    tpu.vector_store %arg4[%c264, %c0_33], %41 {strides = array<i32>} : memref<304x128xf32, #tpu.memory_space<vmem>>, vector<12x128xf32>,
    %c263 = arith.constant 263 : index
    %c0_34 = arith.constant 0 : index
    %46 = vector.load %arg4[%c263, %c0_34] : memref<304x128xf32, #tpu.memory_space<vmem>>, vector<10x128xf32>
    %c265 = arith.constant 265 : index
    %c0_35 = arith.constant 0 : index
    %47 = vector.load %arg4[%c265, %c0_35] : memref<304x128xf32, #tpu.memory_space<vmem>>, vector<10x128xf32>
    %48 = arith.maximumf %46, %47 : vector<10x128xf32>
    %c267 = arith.constant 267 : index
    %c0_36 = arith.constant 0 : index
    %49 = vector.load %arg4[%c267, %c0_36] : memref<304x128xf32, #tpu.memory_space<vmem>>, vector<10x128xf32>
    %50 = arith.maximumf %48, %49 : vector<10x128xf32>
    %51 = vector.extract_strided_slice %50 {offsets = [0, 0], sizes = [9, 128], strides = [1, 1]} : vector<10x128xf32> to vector<9x128xf32>
    %52 = vector.extract_strided_slice %50 {offsets = [1, 0], sizes = [9, 128], strides = [1, 1]} : vector<10x128xf32> to vector<9x128xf32>
    %53 = arith.maximumf %51, %52 : vector<9x128xf32>
    %c280 = arith.constant 280 : index
    %c0_37 = arith.constant 0 : index
    %54 = vector.load %arg4[%c280, %c0_37] : memref<304x128xf32, #tpu.memory_space<vmem>>, vector<8x128xf32>
    tpu.vector_store %arg4[%c280, %c0_37], %0 {strides = array<i32>} : memref<304x128xf32, #tpu.memory_space<vmem>>, vector<8x128xf32>,
    %55 = vector.extract_strided_slice %0 {offsets = [0, 0], sizes = [2, 128], strides = [1, 1]} : vector<8x128xf32> to vector<2x128xf32>
    %c297 = arith.constant 297 : index
    %c0_38 = arith.constant 0 : index
    %56 = vector.load %arg4[%c297, %c0_38] : memref<304x128xf32, #tpu.memory_space<vmem>>, vector<2x128xf32>
    tpu.vector_store %arg4[%c297, %c0_38], %55 {strides = array<i32>} : memref<304x128xf32, #tpu.memory_space<vmem>>, vector<2x128xf32>,
    %c288 = arith.constant 288 : index
    %c0_39 = arith.constant 0 : index
    %57 = vector.load %arg4[%c288, %c0_39] : memref<304x128xf32, #tpu.memory_space<vmem>>, vector<9x128xf32>
    tpu.vector_store %arg4[%c288, %c0_39], %53 {strides = array<i32>} : memref<304x128xf32, #tpu.memory_space<vmem>>, vector<9x128xf32>,
    %58 = tpu.iota {dimensions = array<i32: 0>} : vector<9x128xi32>
    %c1_i32 = arith.constant 1 : i32
    %59 = vector.broadcast %c1_i32 : i32 to vector<9x128xi32>
    %60 = arith.muli %58, %59 : vector<9x128xi32>
    %c286 = arith.constant 286 : index
    %c0_40 = arith.constant 0 : index
    %61 = vector.load %arg4[%c286, %c0_40] : memref<304x128xf32, #tpu.memory_space<vmem>>, vector<9x128xf32>
    %c-2_i32 = arith.constant -2 : i32
    %62 = vector.broadcast %c-2_i32 : i32 to vector<9x128xi32>
    %63 = arith.addi %60, %62 : vector<9x128xi32>
    %c287 = arith.constant 287 : index
    %c0_41 = arith.constant 0 : index
    %64 = vector.load %arg4[%c287, %c0_41] : memref<304x128xf32, #tpu.memory_space<vmem>>, vector<9x128xf32>
    %65 = arith.cmpf ogt, %64, %61 : vector<9x128xf32>
    %66 = arith.select %65, %64, %61 : vector<9x128xi1>, vector<9x128xf32>
    %c-1_i32 = arith.constant -1 : i32
    %67 = vector.broadcast %c-1_i32 : i32 to vector<9x128xi32>
    %68 = arith.addi %60, %67 : vector<9x128xi32>
    %69 = arith.select %65, %68, %63 : vector<9x128xi1>, vector<9x128xi32>
    %c288_42 = arith.constant 288 : index
    %c0_43 = arith.constant 0 : index
    %70 = vector.load %arg4[%c288_42, %c0_43] : memref<304x128xf32, #tpu.memory_space<vmem>>, vector<9x128xf32>
    %71 = arith.cmpf ogt, %70, %66 : vector<9x128xf32>
    %72 = arith.select %71, %70, %66 : vector<9x128xi1>, vector<9x128xf32>
    %c0_i32 = arith.constant 0 : i32
    %73 = vector.broadcast %c0_i32 : i32 to vector<9x128xi32>
    %74 = arith.addi %60, %73 : vector<9x128xi32>
    %75 = arith.select %71, %74, %69 : vector<9x128xi1>, vector<9x128xi32>
    %c289 = arith.constant 289 : index
    %c0_44 = arith.constant 0 : index
    %76 = vector.load %arg4[%c289, %c0_44] : memref<304x128xf32, #tpu.memory_space<vmem>>, vector<9x128xf32>
    %77 = arith.cmpf ogt, %76, %72 : vector<9x128xf32>
    %78 = arith.select %77, %76, %72 : vector<9x128xi1>, vector<9x128xf32>
    %c1_i32_45 = arith.constant 1 : i32
    %79 = vector.broadcast %c1_i32_45 : i32 to vector<9x128xi32>
    %80 = arith.addi %60, %79 : vector<9x128xi32>
    %81 = arith.select %77, %80, %75 : vector<9x128xi1>, vector<9x128xi32>
    %c290 = arith.constant 290 : index
    %c0_46 = arith.constant 0 : index
    %82 = vector.load %arg4[%c290, %c0_46] : memref<304x128xf32, #tpu.memory_space<vmem>>, vector<9x128xf32>
    %83 = arith.cmpf ogt, %82, %78 : vector<9x128xf32>
    %84 = arith.select %83, %82, %78 : vector<9x128xi1>, vector<9x128xf32>
    %c2_i32 = arith.constant 2 : i32
    %85 = vector.broadcast %c2_i32 : i32 to vector<9x128xi32>
    %86 = arith.addi %60, %85 : vector<9x128xi32>
    %87 = arith.select %83, %86, %81 : vector<9x128xi1>, vector<9x128xi32>
    %c0_47 = arith.constant 0 : index
    %c0_48 = arith.constant 0 : index
    %88 = vector.load %arg2[%c0_47, %c0_48] : memref<9x128xf32, #tpu.memory_space<vmem>>, vector<9x128xf32>
    tpu.vector_store %arg2[%c0_47, %c0_48], %84 {strides = array<i32>} : memref<9x128xf32, #tpu.memory_space<vmem>>, vector<9x128xf32>,
    %c0_49 = arith.constant 0 : index
    %c0_50 = arith.constant 0 : index
    %89 = vector.load %arg3[%c0_49, %c0_50] : memref<9x128xi32, #tpu.memory_space<vmem>>, vector<9x128xi32>
    tpu.vector_store %arg3[%c0_49, %c0_50], %87 {strides = array<i32>} : memref<9x128xi32, #tpu.memory_space<vmem>>, vector<9x128xi32>,
    return
  }
  func.func @transform_0(%arg0: i32) -> (i32, i32) {
    %c0_i32 = arith.constant 0 : i32
    %c0_i32_0 = arith.constant 0 : i32
    return %arg0, %c0_i32 : i32, i32
  }
  func.func @transform_1(%arg0: i32) -> (i32, i32) {
    %c0_i32 = arith.constant 0 : i32
    %c0_i32_0 = arith.constant 0 : i32
    return %c0_i32, %arg0 : i32, i32
  }
  func.func @transform_2(%arg0: i32) -> (i32, i32) {
    %c0_i32 = arith.constant 0 : i32
    %c0_i32_0 = arith.constant 0 : i32
    return %c0_i32, %arg0 : i32, i32
  }
}

</mosaic_0001>

<llo_original>
// kernel: tpu_custom_call.1
$region0: #{tpu_custom_call.1}
  #allocation0 [shape = 'u32[]', space=smem, size = 0x4, offset = 0x4, fixed_abs, tag = 'smem constant byte address 0x4 - core index']
  #allocation1 [shape = 'u32[144,128]{1,0:T(1,128)}', space=vmem, size = 0x12000, scoped, tag = 'internal scratch']
  #allocation2 [shape = 'f32[304,128]{1,0:T(8,128)}', space=vmem, size = 0x26000, scoped, tag = 'scratch operand']
  %s0 = inlined_call_operand.hbm [shape: f32[128,128], index: 0, kind: input, shape index: {}]
  %s1 = inlined_call_operand.hbm [shape: f32[9,128], index: 1, kind: output, shape index: {0}]
  %s2 = inlined_call_operand.hbm [shape: s32[9,128], index: 2, kind: output, shape index: {1}]
  %3 = xla_tuple %s1, %s2
  %s4 = sld [smem:[#allocation0]]
  $region26: #{tpu_custom_call.1} parent=0
    _
  %s6 = ssub.s32 1, %s4
  %s7 = scalar_select 0, %s6, %s4
  $region1: #{tpu_custom_call.1} parent=0
    #allocation3 [shape = 'u8[65536]{0}', space=vmem, size = 0x10000, scoped, tag = 'input window, operand 0, single buffered']
    #allocation4 [shape = 's32[1]{0}', space=sflag, size = 0x4, scoped, tag = 'scoped memory for tpu_custom_call.1']
    #allocation5 [shape = 's32[1]{0}', space=sflag, size = 0x4, scoped, tag = 'scoped memory for tpu_custom_call.1']
    #allocation6 [shape = 'u8[8192]{0}', space=vmem, size = 0x2000, scoped, tag = 'output window, operand 0, single buffered']
    #allocation7 [shape = 'u8[8192]{0}', space=vmem, size = 0x2000, scoped, tag = 'output window, operand 1, single buffered']
    #allocation8 [shape = 's32[1]{0}', space=sflag, size = 0x4, scoped, tag = 'scoped memory for tpu_custom_call.1']
    %8 = vsyncpa [#allocation4], 0
    %9 = vsyncpa [#allocation5], 0
    %10 = vsyncpa [#allocation8], 0
    // Predicated region
    $region2: #{tpu_custom_call.1} parent=1 // pred_check
      _
    $region3: #{tpu_custom_call.1} parent=1 // pred_check_branch
      %12 = sbr.rel (0) target = $region5
    $region4: #{tpu_custom_call.1} parent=1 // pred_region
      %s14 = ssub.s32 2048, 2048
      %15 = vsyncadd [#allocation4], %s14
      %s16 = sshll.u32 [#allocation3], 4
      %s17 = int_to_ptr.vmem [resolvable:$true] %s16
      %22 = dma.hbm_to_vmem [thread:$0]  %s0, 2048, %s17, [#allocation4], 128, 128, 8
    $region5: #{tpu_custom_call.1} parent=1 // pred_fallthru
      _
    // Predicated region
    $region6: #{tpu_custom_call.1} parent=1 // pred_check
      _
    $region7: #{tpu_custom_call.1} parent=1 // pred_check_branch
      %24 = sbr.rel (0) target = $region9
    $region8: #{tpu_custom_call.1} parent=1 // pred_region
      %25 = dma.done [#allocation4], 2048
    $region9: #{tpu_custom_call.1} parent=1 // pred_fallthru
      _
    %v26 = vld [vmem:[#allocation3] sm:$0xff]
    %v27 = vld [vmem:[#allocation3 + $0x8] sm:$0xff]
    %v28 = vld [vmem:[#allocation3 + $0x10] sm:$0xff]
    %v29 = vld [vmem:[#allocation3 + $0x18] sm:$0xff]
    %v30 = vld [vmem:[#allocation3 + $0x20] sm:$0xff]
    %v31 = vld [vmem:[#allocation3 + $0x28] sm:$0xff]
    %v32 = vld [vmem:[#allocation3 + $0x30] sm:$0xff]
    %v33 = vld [vmem:[#allocation3 + $0x38] sm:$0xff]
    %v34 = vld [vmem:[#allocation3 + $0x40] sm:$0xff]
    %v35 = vld [vmem:[#allocation3 + $0x48] sm:$0xff]
    %v36 = vld [vmem:[#allocation3 + $0x50] sm:$0xff]
    %v37 = vld [vmem:[#allocation3 + $0x58] sm:$0xff]
    %v38 = vld [vmem:[#allocation3 + $0x60] sm:$0xff]
    %v39 = vld [vmem:[#allocation3 + $0x68] sm:$0xff]
    %v40 = vld [vmem:[#allocation3 + $0x70] sm:$0xff]
    %v41 = vld [vmem:[#allocation3 + $0x78] sm:$0xff]
    %42 = vxpose.xlu0.b32.start [1/16] %v26, 128
    %43 = vxpose.xlu0.b32.cont [2/16] %v27, 128
    %44 = vxpose.xlu0.b32.cont [3/16] %v28, 128
    %45 = vxpose.xlu0.b32.cont [4/16] %v29, 128
    %46 = vxpose.xlu0.b32.cont [5/16] %v30, 128
    %47 = vxpose.xlu0.b32.cont [6/16] %v31, 128
    %48 = vxpose.xlu0.b32.cont [7/16] %v32, 128
    %49 = vxpose.xlu0.b32.cont [8/16] %v33, 128
    %50 = vxpose.xlu0.b32.cont [9/16] %v34, 128
    %51 = vxpose.xlu0.b32.cont [10/16] %v35, 128
    %52 = vxpose.xlu0.b32.cont [11/16] %v36, 128
    %53 = vxpose.xlu0.b32.cont [12/16] %v37, 128
    %54 = vxpose.xlu0.b32.cont [13/16] %v38, 128
    %55 = vxpose.xlu0.b32.cont [14/16] %v39, 128
    %56 = vxpose.xlu0.b32.cont [15/16] %v40, 128
    %57 = vxpose.xlu0.b32.end [16/16] %v41, 128
    %v58 = vpop.trf.xlu0
    %v59 = vpop.trf.xlu0
    %v60 = vpop.trf.xlu0
    %v61 = vpop.trf.xlu0
    %v62 = vpop.trf.xlu0
    %v63 = vpop.trf.xlu0
    %v64 = vpop.trf.xlu0
    %v65 = vpop.trf.xlu0
    %v66 = vpop.trf.xlu0
    %v67 = vpop.trf.xlu0
    %v68 = vpop.trf.xlu0
    %v69 = vpop.trf.xlu0
    %v70 = vpop.trf.xlu0
    %v71 = vpop.trf.xlu0
    %v72 = vpop.trf.xlu0
    %v73 = vpop.trf.xlu0
    %74 = vst [vmem:[#allocation2] sm:$0xff] %v58
    %75 = vst [vmem:[#allocation2 + $0x8] sm:$0xff] %v59
    %76 = vst [vmem:[#allocation2 + $0x10] sm:$0xff] %v60
    %77 = vst [vmem:[#allocation2 + $0x18] sm:$0xff] %v61
    %78 = vst [vmem:[#allocation2 + $0x20] sm:$0xff] %v62
    %79 = vst [vmem:[#allocation2 + $0x28] sm:$0xff] %v63
    %80 = vst [vmem:[#allocation2 + $0x30] sm:$0xff] %v64
    %81 = vst [vmem:[#allocation2 + $0x38] sm:$0xff] %v65
    %82 = vst [vmem:[#allocation2 + $0x40] sm:$0xff] %v66
    %83 = vst [vmem:[#allocation2 + $0x48] sm:$0xff] %v67
    %84 = vst [vmem:[#allocation2 + $0x50] sm:$0xff] %v68
    %85 = vst [vmem:[#allocation2 + $0x58] sm:$0xff] %v69
    %86 = vst [vmem:[#allocation2 + $0x60] sm:$0xff] %v70
    %87 = vst [vmem:[#allocation2 + $0x68] sm:$0xff] %v71
    %88 = vst [vmem:[#allocation2 + $0x70] sm:$0xff] %v72
    %89 = vst [vmem:[#allocation2 + $0x78] sm:$0xff] %v73
    %v90 = vld [vmem:[#allocation2] ss:$3 sm:$0xff]
    %s91 = scalar_lea.vmem [#allocation2], 24
    %v92 = vld [vmem:[%s91] ss:$3 sm:$0xff]
    %s93 = scalar_lea.vmem [#allocation2], 48
    %v94 = vld [vmem:[%s93] ss:$3 sm:$0xff]
    %s95 = scalar_lea.vmem [#allocation2], 72
    %v96 = vld [vmem:[%s95] ss:$3 sm:$0xff]
    %s97 = scalar_lea.vmem [#allocation2], 96
    %v98 = vld [vmem:[%s97] ss:$3 sm:$0xff]
    %s99 = scalar_lea.vmem [#allocation2], 120
    %v100 = vld [vmem:[%s99] ss:$3 sm:$0x3]
    %s101 = scalar_lea.vmem [#allocation2], 1
    %v102 = vld [vmem:[%s101] ss:$3 sm:$0xff]
    %s103 = scalar_lea.vmem [#allocation2], 25
    %v104 = vld [vmem:[%s103] ss:$3 sm:$0xff]
    %s105 = scalar_lea.vmem [#allocation2], 49
    %v106 = vld [vmem:[%s105] ss:$3 sm:$0xff]
    %s107 = scalar_lea.vmem [#allocation2], 73
    %v108 = vld [vmem:[%s107] ss:$3 sm:$0xff]
    %s109 = scalar_lea.vmem [#allocation2], 97
    %v110 = vld [vmem:[%s109] ss:$3 sm:$0xff]
    %s111 = scalar_lea.vmem [#allocation2], 121
    %v112 = vld [vmem:[%s111] ss:$3 sm:$0x3]
    %v113 = vmax.f32 %v90, %v102
    %v114 = vmax.f32 %v92, %v104
    %v115 = vmax.f32 %v94, %v106
    %v116 = vmax.f32 %v96, %v108
    %v117 = vmax.f32 %v98, %v110
    %v118 = vmax.f32 %v100, %v112
    %s119 = scalar_lea.vmem [#allocation2], 2
    %v120 = vld [vmem:[%s119] ss:$3 sm:$0xff]
    %s121 = scalar_lea.vmem [#allocation2], 26
    %v122 = vld [vmem:[%s121] ss:$3 sm:$0xff]
    %s123 = scalar_lea.vmem [#allocation2], 50
    %v124 = vld [vmem:[%s123] ss:$3 sm:$0xff]
    %s125 = scalar_lea.vmem [#allocation2], 74
    %v126 = vld [vmem:[%s125] ss:$3 sm:$0xff]
    %s127 = scalar_lea.vmem [#allocation2], 98
    %v128 = vld [vmem:[%s127] ss:$3 sm:$0xff]
    %s129 = scalar_lea.vmem [#allocation2], 122
    %v130 = vld [vmem:[%s129] ss:$3 sm:$0x3]
    %v131 = vmax.f32 %v113, %v120
    %v132 = vmax.f32 %v114, %v122
    %v133 = vmax.f32 %v115, %v124
    %v134 = vmax.f32 %v116, %v126
    %v135 = vmax.f32 %v117, %v128
    %v136 = vmax.f32 %v118, %v130
    %137 = vst [vmem:[#allocation2 + $0x80] sm:$0xff] -inf
    %138 = vst [vmem:[#allocation2 + $0xb2] sm:$0x3] -inf
    %139 = vst [vmem:[#allocation2 + $0x88] sm:$0xff] %v131
    %140 = vst [vmem:[#allocation2 + $0x90] sm:$0xff] %v132
    %141 = vst [vmem:[#allocation2 + $0x98] sm:$0xff] %v133
    %142 = vst [vmem:[#allocation2 + $0xa0] sm:$0xff] %v134
    %143 = vst [vmem:[#allocation2 + $0xa8] sm:$0xff] %v135
    %144 = vst [vmem:[#allocation2 + $0xb0] sm:$0x3] %v136
    %s145 = scalar_lea.vmem [#allocation2], 134
    %v146 = vld [vmem:[%s145] ss:$2 sm:$0xff]
    %s147 = scalar_lea.vmem [#allocation2], 150
    %v148 = vld [vmem:[%s147] ss:$2 sm:$0xff]
    %s149 = scalar_lea.vmem [#allocation2], 166
    %v150 = vld [vmem:[%s149] ss:$2 sm:$0x3f]
    %s151 = scalar_lea.vmem [#allocation2], 135
    %v152 = vld [vmem:[%s151] ss:$2 sm:$0xff]
    %s153 = scalar_lea.vmem [#allocation2], 151
    %v154 = vld [vmem:[%s153] ss:$2 sm:$0xff]
    %s155 = scalar_lea.vmem [#allocation2], 167
    %v156 = vld [vmem:[%s155] ss:$2 sm:$0x3f]
    %v157 = vmax.f32 %v146, %v152
    %v158 = vmax.f32 %v148, %v154
    %v159 = vmax.f32 %v150, %v156
    %s160 = scalar_lea.vmem [#allocation2], 136
    %v161 = vld [vmem:[%s160] ss:$2 sm:$0xff]
    %s162 = scalar_lea.vmem [#allocation2], 152
    %v163 = vld [vmem:[%s162] ss:$2 sm:$0xff]
    %s164 = scalar_lea.vmem [#allocation2], 168
    %v165 = vld [vmem:[%s164] ss:$2 sm:$0x3f]
    %v166 = vmax.f32 %v157, %v161
    %v167 = vmax.f32 %v158, %v163
    %v168 = vmax.f32 %v159, %v165
    %s169 = scalar_lea.vmem [#allocation2], 137
    %v170 = vld [vmem:[%s169] ss:$2 sm:$0xff]
    %s171 = scalar_lea.vmem [#allocation2], 153
    %v172 = vld [vmem:[%s171] ss:$2 sm:$0xff]
    %s173 = scalar_lea.vmem [#allocation2], 169
    %v174 = vld [vmem:[%s173] ss:$2 sm:$0x3f]
    %v175 = vmax.f32 %v166, %v170
    %v176 = vmax.f32 %v167, %v172
    %v177 = vmax.f32 %v168, %v174
    %178 = vst [vmem:[#allocation2 + $0xb8] sm:$0xff] -inf
    %179 = vst [vmem:[#allocation2 + $0xd6] sm:$0x1] -inf
    %180 = vst [vmem:[#allocation2 + $0xc0] sm:$0xff] %v175
    %181 = vst [vmem:[#allocation2 + $0xc8] sm:$0xff] %v176
    %182 = vst [vmem:[#allocation2 + $0xd0] sm:$0x3f] %v177
    %v183 = vld [vmem:[#allocation2 + $0xbf] sm:$0xff]
    %v184 = vld [vmem:[#allocation2 + $0xc7] sm:$0xff]
    %v185 = vld [vmem:[#allocation2 + $0xcf] sm:$0x3f]
    %v186 = vld [vmem:[#allocation2 + $0xc0] sm:$0xff]
    %v187 = vld [vmem:[#allocation2 + $0xc8] sm:$0xff]
    %v188 = vld [vmem:[#allocation2 + $0xd0] sm:$0x3f]
    %v189 = vmax.f32 %v183, %v186
    %v190 = vmax.f32 %v184, %v187
    %v191 = vmax.f32 %v185, %v188
    %v192 = vld [vmem:[#allocation2 + $0xc1] sm:$0xff]
    %v193 = vld [vmem:[#allocation2 + $0xc9] sm:$0xff]
    %v194 = vld [vmem:[#allocation2 + $0xd1] sm:$0x3f]
    %v195 = vmax.f32 %v189, %v192
    %v196 = vmax.f32 %v190, %v193
    %v197 = vmax.f32 %v191, %v194
    %198 = vst [vmem:[#allocation2 + $0xd8] sm:$0xff] -inf
    %199 = vst [vmem:[#allocation2 + $0xf6] sm:$0x7] -inf
    %200 = vst [vmem:[#allocation2 + $0xe0] sm:$0xff] %v195
    %201 = vst [vmem:[#allocation2 + $0xe8] sm:$0xff] %v196
    %202 = vst [vmem:[#allocation2 + $0xf0] sm:$0x3f] %v197
    %s203 = scalar_lea.vmem [#allocation2], 222
    %v204 = vld [vmem:[%s203] ss:$2 sm:$0xff]
    %s205 = scalar_lea.vmem [#allocation2], 238
    %v206 = vld [vmem:[%s205] ss:$2 sm:$0xf]
    %s207 = scalar_lea.vmem [#allocation2], 223
    %v208 = vld [vmem:[%s207] ss:$2 sm:$0xff]
    %s209 = scalar_lea.vmem [#allocation2], 239
    %v210 = vld [vmem:[%s209] ss:$2 sm:$0xf]
    %v211 = vmax.f32 %v204, %v208
    %v212 = vmax.f32 %v206, %v210
    %s213 = scalar_lea.vmem [#allocation2], 224
    %v214 = vld [vmem:[%s213] ss:$2 sm:$0xff]
    %s215 = scalar_lea.vmem [#allocation2], 240
    %v216 = vld [vmem:[%s215] ss:$2 sm:$0xf]
    %v217 = vmax.f32 %v211, %v214
    %v218 = vmax.f32 %v212, %v216
    %s219 = scalar_lea.vmem [#allocation2], 225
    %v220 = vld [vmem:[%s219] ss:$2 sm:$0xff]
    %s221 = scalar_lea.vmem [#allocation2], 241
    %v222 = vld [vmem:[%s221] ss:$2 sm:$0xf]
    %v223 = vmax.f32 %v217, %v220
    %v224 = vmax.f32 %v218, %v222
    %s225 = scalar_lea.vmem [#allocation2], 226
    %v226 = vld [vmem:[%s225] ss:$2 sm:$0xff]
    %s227 = scalar_lea.vmem [#allocation2], 242
    %v228 = vld [vmem:[%s227] ss:$2 sm:$0xf]
    %v229 = vmax.f32 %v223, %v226
    %v230 = vmax.f32 %v224, %v228
    %231 = vst [vmem:[#allocation2 + $0x100] sm:$0xff] -inf
    %232 = vst [vmem:[#allocation2 + $0x114] sm:$0x1] -inf
    %233 = vst [vmem:[#allocation2 + $0x108] sm:$0xff] %v229
    %234 = vst [vmem:[#allocation2 + $0x110] sm:$0xf] %v230
    %v235 = vld [vmem:[#allocation2 + $0x107] sm:$0xff]
    %v236 = vld [vmem:[#allocation2 + $0x10f] sm:$0x3]
    %v237 = vld [vmem:[#allocation2 + $0x109] sm:$0xff]
    %v238 = vld [vmem:[#allocation2 + $0x111] sm:$0x3]
    %v239 = vmax.f32 %v235, %v237
    %v240 = vmax.f32 %v236, %v238
    %v241 = vld [vmem:[#allocation2 + $0x10b] sm:$0xff]
    %v242 = vld [vmem:[#allocation2 + $0x113] sm:$0x3]
    %v243 = vmax.f32 %v239, %v241
    %v244 = vmax.f32 %v240, %v242
    %vm247 = vcmask 1046528
    %v248 = vrot.slane %v243, 1
    %v249 = vrot.slane %v244, 1
    %v250 = vsel %vm247, %v248, %v249
    %v253 = vmax.f32 %v243, %v250
    %v254 = vmax.f32 %v244, %v249
    %255 = vst [vmem:[#allocation2 + $0x118] sm:$0xff] -inf
    %256 = vst [vmem:[#allocation2 + $0x129] sm:$0x3] -inf
    %257 = vst [vmem:[#allocation2 + $0x120] sm:$0xff] %v253
    %258 = vst [vmem:[#allocation2 + $0x128] sm:$0x1] %v254
    %v259 = vlaneseq
    %v260 = vshrl.u32 %v259, 7
    %v261 = vadd.s32 %v260, 8
    %v262 = vld [vmem:[#allocation2 + $0x11e] sm:$0xff]
    %v263 = vld [vmem:[#allocation2 + $0x126] sm:$0x1]
    %v264 = vadd.s32 %v260, 4294967294
    %v265 = vadd.s32 %v261, 4294967294
    %v266 = vld [vmem:[#allocation2 + $0x11f] sm:$0xff]
    %v267 = vld [vmem:[#allocation2 + $0x127] sm:$0x1]
    %vm268 = vcmp.gt.f32.partialorder %v266, %v262
    %vm269 = vcmp.gt.f32.partialorder %v267, %v263
    %v270 = vsel %vm268, %v266, %v262
    %v271 = vsel %vm269, %v267, %v263
    %v272 = vadd.s32 %v260, 4294967295
    %v273 = vadd.s32 %v261, 4294967295
    %v274 = vsel %vm268, %v272, %v264
    %v275 = vsel %vm269, %v273, %v265
    %v276 = vld [vmem:[#allocation2 + $0x120] sm:$0xff]
    %v277 = vld [vmem:[#allocation2 + $0x128] sm:$0x1]
    %vm278 = vcmp.gt.f32.partialorder %v276, %v270
    %vm279 = vcmp.gt.f32.partialorder %v277, %v271
    %v280 = vsel %vm278, %v276, %v270
    %v281 = vsel %vm279, %v277, %v271
    %v282 = vsel %vm278, %v260, %v274
    %v283 = vsel %vm279, %v261, %v275
    %v284 = vld [vmem:[#allocation2 + $0x121] sm:$0xff]
    %v285 = vld [vmem:[#allocation2 + $0x129] sm:$0x1]
    %vm286 = vcmp.gt.f32.partialorder %v284, %v280
    %vm287 = vcmp.gt.f32.partialorder %v285, %v281
    %v288 = vsel %vm286, %v284, %v280
    %v289 = vsel %vm287, %v285, %v281
    %v290 = vadd.s32 %v260, 1
    %v291 = vadd.s32 %v261, 1
    %v292 = vsel %vm286, %v290, %v282
    %v293 = vsel %vm287, %v291, %v283
    %v294 = vld [vmem:[#allocation2 + $0x122] sm:$0xff]
    %v295 = vld [vmem:[#allocation2 + $0x12a] sm:$0x1]
    %vm296 = vcmp.gt.f32.partialorder %v294, %v288
    %vm297 = vcmp.gt.f32.partialorder %v295, %v289
    %v298 = vsel %vm296, %v294, %v288
    %v299 = vsel %vm297, %v295, %v289
    %v300 = vadd.s32 %v260, 2
    %v301 = vadd.s32 %v261, 2
    %v302 = vsel %vm296, %v300, %v292
    %v303 = vsel %vm297, %v301, %v293
    %304 = vst [vmem:[#allocation6] sm:$0xff] %v298
    %305 = vst [vmem:[#allocation6 + $0x8] sm:$0x1] %v299
    %306 = vst [vmem:[#allocation7] sm:$0xff] %v302
    %307 = vst [vmem:[#allocation7 + $0x8] sm:$0x1] %v303
    // Predicated region
    $region10: #{tpu_custom_call.1} parent=1 // pred_check
      _
    $region11: #{tpu_custom_call.1} parent=1 // pred_check_branch
      %309 = sbr.rel (0) target = $region13
    $region12: #{tpu_custom_call.1} parent=1 // pred_region
      %s311 = ssub.s32 256, 256
      %312 = vsyncadd [#allocation5], %s311
      %s313 = sshll.u32 [#allocation6], 4
      %s314 = int_to_ptr.vmem [resolvable:$true] %s313
      %319 = dma.vmem_to_hbm [thread:$0]  %s314, 256, %s1, [#allocation5], 128, 128, 8
    $region13: #{tpu_custom_call.1} parent=1 // pred_fallthru
      _
    // Predicated region
    $region14: #{tpu_custom_call.1} parent=1 // pred_check
      _
    $region15: #{tpu_custom_call.1} parent=1 // pred_check_branch
      %321 = sbr.rel (0) target = $region17
    $region16: #{tpu_custom_call.1} parent=1 // pred_region
      %s323 = ssub.s32 256, 256
      %324 = vsyncadd [#allocation8], %s323
      %s325 = sshll.u32 [#allocation7], 4
      %s326 = int_to_ptr.vmem [resolvable:$true] %s325
      %331 = dma.vmem_to_hbm [thread:$0]  %s326, 256, %s2, [#allocation8], 128, 128, 8
    $region17: #{tpu_custom_call.1} parent=1 // pred_fallthru
      _
    // Predicated region
    $region18: #{tpu_custom_call.1} parent=1 // pred_check
      _
    $region19: #{tpu_custom_call.1} parent=1 // pred_check_branch
      %333 = sbr.rel (0) target = $region21
    $region20: #{tpu_custom_call.1} parent=1 // pred_region
      %334 = dma.done [#allocation5], 256
    $region21: #{tpu_custom_call.1} parent=1 // pred_fallthru
      _
    // Predicated region
    $region22: #{tpu_custom_call.1} parent=1 // pred_check
      _
    $region23: #{tpu_custom_call.1} parent=1 // pred_check_branch
      %336 = sbr.rel (0) target = $region25
    $region24: #{tpu_custom_call.1} parent=1 // pred_region
      %337 = dma.done [#allocation8], 256
    $region25: #{tpu_custom_call.1} parent=1 // pred_fallthru
      _
    %338 = vsyncpa [#allocation4], 1
    %339 = vsyncpa [#allocation5], 1
    %340 = vsyncpa [#allocation8], 1

</llo_original>
